<compile_context>
chip_gen: v5e
topology: v5e:2x2
jax: 0.10.0
libtpu: 0.0.40
codegen_flags: <defaults>
</compile_context>

<pallas_src>
import jax
import jax.numpy as jnp
from jax.experimental import pallas as pl
from jax.experimental.pallas import tpu as pltpu

INPUT_SIZE = 16
HIDDEN1 = 128
HIDDEN2 = 64
NUM_CLASSES = 3

HIDDEN2_PAD = 128   # pad hidden2 lanes 64 -> 128 (zero columns, exact)
HEAD_WIDTH = 128    # fused (wqi | quality | zeros) head, lane-dense MXU output


def _round_up(n, m):
    return ((n + m - 1) // m) * m


def _mlp_kernel(x_ref, w1_ref, b1_ref, w2_ref, b2_ref, wh_ref, bh_ref,
                wqi_ref, q_ref):
    """One batch tile, fully in VMEM: layer1+relu, layer2+relu, fused heads."""
    cdt = w1_ref.dtype  # MXU operand dtype (f32, or bf16 when use_bf16=True)
    h1 = jnp.dot(x_ref[...], w1_ref[...],
                 preferred_element_type=jnp.float32) + b1_ref[...]
    h1 = jnp.maximum(h1, 0.0)                      # relu(layer1), f32 VPU
    # dropout(p=0.1): identity at inference
    h2 = jnp.dot(h1.astype(cdt), w2_ref[...],
                 preferred_element_type=jnp.float32) + b2_ref[...]
    h2 = jnp.maximum(h2, 0.0)                      # relu(layer2), f32 VPU
    # fused heads: one MXU push producing (tile_b, 128); only 4 lanes are real.
    head = jnp.dot(h2.astype(cdt), wh_ref[...],
                   preferred_element_type=jnp.float32) + bh_ref[...]
    # Store only the useful lanes -> narrow HBM writeback.
    wqi_ref[...] = head[:, 0:1]
    q_ref[...] = head[:, 1:1 + NUM_CLASSES]


def prepare_params(params, *, use_bf16=True):
    """One-time fuse / pad / cast of PyTorch-layout params (hoisted out of the
    per-call forward path). Returns the tuple consumed by water_quality_forward."""
    w1, b1, w2, b2, wq, bq, wc, bc = params
    # hidden2: 64 -> 128 with zero columns (relu(0 + 0) = 0 is exact).
    w2p = jnp.pad(w2, ((0, 0), (0, HIDDEN2_PAD - HIDDEN2)))
    b2p = jnp.pad(b2, ((0, 0), (0, HIDDEN2_PAD - HIDDEN2)))
    # fused head: column [0]=wqi, [1:4]=quality, rest zero.
    wh = jnp.zeros((HIDDEN2_PAD, HEAD_WIDTH), jnp.float32)
    wh = wh.at[:HIDDEN2, 0:1].set(wq)
    wh = wh.at[:HIDDEN2, 1:1 + NUM_CLASSES].set(wc)
    bh = jnp.zeros((1, HEAD_WIDTH), jnp.float32)
    bh = bh.at[:, 0:1].set(bq)
    bh = bh.at[:, 1:1 + NUM_CLASSES].set(bc)
    cdt = jnp.bfloat16 if use_bf16 else jnp.float32
    # MXU operands in cdt; biases stay f32 (f32 bias add / ReLU on the VPU).
    return (w1.astype(cdt), b1, w2p.astype(cdt), b2p, wh.astype(cdt), bh)


def _choose_tile(B, tile_b, granule):
    """Pick the batch tile: big tiles, but >= 2 grid blocks for large batches
    so v7x's two TensorCores both get work (cheap on single-TC chips)."""
    b_full = _round_up(B, granule)
    tb = min(_round_up(tile_b, granule), b_full)
    if b_full >= 1024:
        tb = min(tb, _round_up(pl.cdiv(b_full, 2), granule))
    b_pad = _round_up(b_full, tb)
    return tb, b_pad


def water_quality_forward(x, prepped, *, tile_b=4096):
    """x: (B, input_size) float32; prepped = prepare_params(params, ...).
    Returns (wqi (B,1) f32, quality (B,num_classes) f32)."""
    w1k, b1, w2k, b2p, whk, bh = prepped
    cdt = w1k.dtype
    B, F = x.shape

    granule = 16 if cdt == jnp.bfloat16 else 8   # bf16 sublane packing = 16
    tile_b, Bp = _choose_tile(B, tile_b, granule)

    xk = x.astype(cdt)
    if Bp != B:
        xk = jnp.pad(xk, ((0, Bp - B), (0, 0)))
    grid = (Bp // tile_b,)

    rep = lambda shape: pl.BlockSpec(shape, lambda i: (0, 0))  # same block every step

    wqi, quality = pl.pallas_call(
        _mlp_kernel,
        out_shape=(jax.ShapeDtypeStruct((Bp, 1), jnp.float32),
                   jax.ShapeDtypeStruct((Bp, NUM_CLASSES), jnp.float32)),
        grid_spec=pltpu.PrefetchScalarGridSpec(
            num_scalar_prefetch=0,
            grid=grid,
            in_specs=[
                pl.BlockSpec((tile_b, F), lambda i: (i, 0)),          # x tile
                rep((F, HIDDEN1)), rep((1, HIDDEN1)),                 # layer1
                rep((HIDDEN1, HIDDEN2_PAD)), rep((1, HIDDEN2_PAD)),   # layer2 (padded)
                rep((HIDDEN2_PAD, HEAD_WIDTH)), rep((1, HEAD_WIDTH)), # fused heads
            ],
            out_specs=[pl.BlockSpec((tile_b, 1), lambda i: (i, 0)),
                       pl.BlockSpec((tile_b, NUM_CLASSES), lambda i: (i, 0))],
        ),
        compiler_params=pltpu.CompilerParams(
            dimension_semantics=("parallel",)),
    )(xk, w1k, b1, w2k, b2p, whk, bh)

    return wqi[:B], quality[:B]


def init_params(key):
    """Deterministic synthetic parameters with PyTorch Linear shapes (stored transposed)."""
    ks = jax.random.split(key, 8)

    def lin(kw, kb, fan_in, fan_out):
        bound = 1.0 / jnp.sqrt(fan_in)
        w = jax.random.uniform(kw, (fan_in, fan_out), jnp.float32, -bound, bound)
        b = jax.random.uniform(kb, (1, fan_out), jnp.float32, -bound, bound)
        return w, b

    w1, b1 = lin(ks[0], ks[1], INPUT_SIZE, HIDDEN1)
    w2, b2 = lin(ks[2], ks[3], HIDDEN1, HIDDEN2)
    wq, bq = lin(ks[4], ks[5], HIDDEN2, 1)
    wc, bc = lin(ks[6], ks[7], HIDDEN2, NUM_CLASSES)
    return (w1, b1, w2, b2, wq, bq, wc, bc)


def reference_forward(x, params):
    w1, b1, w2, b2, wq, bq, wc, bc = params
    h1 = jnp.maximum(x @ w1 + b1, 0.0)
    h2 = jnp.maximum(h1 @ w2 + b2, 0.0)
    return h2 @ wq + bq, h2 @ wc + bc


if __name__ == "__main__":
    key = jax.random.PRNGKey(0)
    kx, kp = jax.random.split(key)
    params = init_params(kp)

    # --- exact f32 path (tight tolerance) ---
    prepped_f32 = prepare_params(params, use_bf16=False)
    B = 16
    x = jax.random.normal(kx, (B, INPUT_SIZE), jnp.float32)
    wqi, quality = water_quality_forward(x, prepped_f32)
    jax.block_until_ready((wqi, quality))
    wqi_ref, quality_ref = reference_forward(x, params)
    assert wqi.shape == (B, 1) and quality.shape == (B, NUM_CLASSES)
    assert jnp.allclose(wqi, wqi_ref, atol=1e-5, rtol=1e-5)
    assert jnp.allclose(quality, quality_ref, atol=1e-5, rtol=1e-5)

    # --- ragged batch exercises the pad-to-tile path ---
    B2 = 13
    x2 = jax.random.normal(kx, (B2, INPUT_SIZE), jnp.float32)
    wqi2, quality2 = water_quality_forward(x2, prepped_f32)
    jax.block_until_ready((wqi2, quality2))
    wqi2_ref, quality2_ref = reference_forward(x2, params)
    assert jnp.allclose(wqi2, wqi2_ref, atol=1e-5, rtol=1e-5)
    assert jnp.allclose(quality2, quality2_ref, atol=1e-5, rtol=1e-5)

    # --- default bf16 MXU-operand path (looser tolerance, ~1e-3 relative) ---
    prepped_bf16 = prepare_params(params, use_bf16=True)
    wqi_b, quality_b = water_quality_forward(x, prepped_bf16)
    jax.block_until_ready((wqi_b, quality_b))
    assert jnp.allclose(wqi_b, wqi_ref, atol=3e-2, rtol=3e-2)
    assert jnp.allclose(quality_b, quality_ref, atol=3e-2, rtol=3e-2)

    print("KERNEL_OK")
</pallas_src>

<mosaic_0001>
module attributes {stable_mosaic.version = 11 : i64} {
  func.func @_mlp_kernel(%arg0: i32, %arg1: memref<16x16xf32, #tpu.memory_space<vmem>>, %arg2: memref<16x128xf32, #tpu.memory_space<vmem>>, %arg3: memref<1x128xf32, #tpu.memory_space<vmem>>, %arg4: memref<128x128xf32, #tpu.memory_space<vmem>>, %arg5: memref<1x128xf32, #tpu.memory_space<vmem>>, %arg6: memref<128x128xf32, #tpu.memory_space<vmem>>, %arg7: memref<1x128xf32, #tpu.memory_space<vmem>>, %arg8: memref<16x1xf32, #tpu.memory_space<vmem>>, %arg9: memref<16x3xf32, #tpu.memory_space<vmem>>) attributes {dimension_semantics = [#tpu.dimension_semantics<parallel>], iteration_bounds = array<i64: 1>, scalar_prefetch = 0 : i64, scratch_operands = 0 : i64, tpu.core_type = #tpu.core_type<tc>, window_params = [{transform_indices = @transform_0, window_bounds = array<i64: 16, 16>}, {pipeline_mode = #tpu.pipeline_mode<synchronous>, transform_indices = @transform_1, window_bounds = array<i64: 16, 128>}, {pipeline_mode = #tpu.pipeline_mode<synchronous>, transform_indices = @transform_2, window_bounds = array<i64: 1, 128>}, {pipeline_mode = #tpu.pipeline_mode<synchronous>, transform_indices = @transform_3, window_bounds = array<i64: 128, 128>}, {pipeline_mode = #tpu.pipeline_mode<synchronous>, transform_indices = @transform_4, window_bounds = array<i64: 1, 128>}, {pipeline_mode = #tpu.pipeline_mode<synchronous>, transform_indices = @transform_5, window_bounds = array<i64: 128, 128>}, {pipeline_mode = #tpu.pipeline_mode<synchronous>, transform_indices = @transform_6, window_bounds = array<i64: 1, 128>}, {transform_indices = @transform_7, window_bounds = array<i64: 16, 1>}, {transform_indices = @transform_8, window_bounds = array<i64: 16, 3>}]} {
    %c0 = arith.constant 0 : index
    %c0_0 = arith.constant 0 : index
    %0 = vector.load %arg1[%c0, %c0_0] : memref<16x16xf32, #tpu.memory_space<vmem>>, vector<16x16xf32>
    %c0_1 = arith.constant 0 : index
    %c0_2 = arith.constant 0 : index
    %1 = vector.load %arg2[%c0_1, %c0_2] : memref<16x128xf32, #tpu.memory_space<vmem>>, vector<16x128xf32>
    %cst = arith.constant dense<0.000000e+00> : vector<16x128xf32>
    %2 = tpu.matmul %0, %1, %cst {dimension_numbers = #tpu.dot_dimension_numbers<[1], [0], [0], [1], [0, 0, 1, 1], [], []>} : vector<16x16xf32>, vector<16x128xf32>, vector<16x128xf32> -> vector<16x128xf32>
    %c0_3 = arith.constant 0 : index
    %c0_4 = arith.constant 0 : index
    %3 = vector.load %arg3[%c0_3, %c0_4] : memref<1x128xf32, #tpu.memory_space<vmem>>, vector<1x128xf32>
    %4 = vector.broadcast %3 : vector<1x128xf32> to vector<16x128xf32>
    %5 = arith.addf %2, %4 : vector<16x128xf32>
    %cst_5 = arith.constant 0.000000e+00 : f32
    %6 = vector.broadcast %cst_5 : f32 to vector<16x128xf32>
    %7 = arith.maximumf %5, %6 : vector<16x128xf32>
    %c0_6 = arith.constant 0 : index
    %c0_7 = arith.constant 0 : index
    %8 = vector.load %arg4[%c0_6, %c0_7] : memref<128x128xf32, #tpu.memory_space<vmem>>, vector<128x128xf32>
    %cst_8 = arith.constant dense<0.000000e+00> : vector<16x128xf32>
    %9 = tpu.matmul %7, %8, %cst_8 {dimension_numbers = #tpu.dot_dimension_numbers<[1], [0], [0], [1], [0, 0, 1, 1], [], []>} : vector<16x128xf32>, vector<128x128xf32>, vector<16x128xf32> -> vector<16x128xf32>
    %c0_9 = arith.constant 0 : index
    %c0_10 = arith.constant 0 : index
    %10 = vector.load %arg5[%c0_9, %c0_10] : memref<1x128xf32, #tpu.memory_space<vmem>>, vector<1x128xf32>
    %11 = vector.broadcast %10 : vector<1x128xf32> to vector<16x128xf32>
    %12 = arith.addf %9, %11 : vector<16x128xf32>
    %cst_11 = arith.constant 0.000000e+00 : f32
    %13 = vector.broadcast %cst_11 : f32 to vector<16x128xf32>
    %14 = arith.maximumf %12, %13 : vector<16x128xf32>
    %c0_12 = arith.constant 0 : index
    %c0_13 = arith.constant 0 : index
    %15 = vector.load %arg6[%c0_12, %c0_13] : memref<128x128xf32, #tpu.memory_space<vmem>>, vector<128x128xf32>
    %cst_14 = arith.constant dense<0.000000e+00> : vector<16x128xf32>
    %16 = tpu.matmul %14, %15, %cst_14 {dimension_numbers = #tpu.dot_dimension_numbers<[1], [0], [0], [1], [0, 0, 1, 1], [], []>} : vector<16x128xf32>, vector<128x128xf32>, vector<16x128xf32> -> vector<16x128xf32>
    %c0_15 = arith.constant 0 : index
    %c0_16 = arith.constant 0 : index
    %17 = vector.load %arg7[%c0_15, %c0_16] : memref<1x128xf32, #tpu.memory_space<vmem>>, vector<1x128xf32>
    %18 = vector.broadcast %17 : vector<1x128xf32> to vector<16x128xf32>
    %19 = arith.addf %16, %18 : vector<16x128xf32>
    %20 = vector.extract_strided_slice %19 {offsets = [0, 0], sizes = [16, 1], strides = [1, 1]} : vector<16x128xf32> to vector<16x1xf32>
    %c0_17 = arith.constant 0 : index
    %c0_18 = arith.constant 0 : index
    %21 = vector.load %arg8[%c0_17, %c0_18] : memref<16x1xf32, #tpu.memory_space<vmem>>, vector<16x1xf32>
    tpu.vector_store %arg8[%c0_17, %c0_18], %20 {strides = array<i32>} : memref<16x1xf32, #tpu.memory_space<vmem>>, vector<16x1xf32>,
    %22 = vector.extract_strided_slice %19 {offsets = [0, 1], sizes = [16, 3], strides = [1, 1]} : vector<16x128xf32> to vector<16x3xf32>
    %c0_19 = arith.constant 0 : index
    %c0_20 = arith.constant 0 : index
    %23 = vector.load %arg9[%c0_19, %c0_20] : memref<16x3xf32, #tpu.memory_space<vmem>>, vector<16x3xf32>
    tpu.vector_store %arg9[%c0_19, %c0_20], %22 {strides = array<i32>} : memref<16x3xf32, #tpu.memory_space<vmem>>, vector<16x3xf32>,
    return
  }
  func.func @transform_0(%arg0: i32) -> (i32, i32) {
    %c0_i32 = arith.constant 0 : i32
    %c0_i32_0 = arith.constant 0 : i32
    return %arg0, %c0_i32 : i32, i32
  }
  func.func @transform_1(%arg0: i32) -> (i32, i32) {
    %c0_i32 = arith.constant 0 : i32
    %c0_i32_0 = arith.constant 0 : i32
    %c0_i32_1 = arith.constant 0 : i32
    return %c0_i32, %c0_i32_0 : i32, i32
  }
  func.func @transform_2(%arg0: i32) -> (i32, i32) {
    %c0_i32 = arith.constant 0 : i32
    %c0_i32_0 = arith.constant 0 : i32
    %c0_i32_1 = arith.constant 0 : i32
    return %c0_i32, %c0_i32_0 : i32, i32
  }
  func.func @transform_3(%arg0: i32) -> (i32, i32) {
    %c0_i32 = arith.constant 0 : i32
    %c0_i32_0 = arith.constant 0 : i32
    %c0_i32_1 = arith.constant 0 : i32
    return %c0_i32, %c0_i32_0 : i32, i32
  }
  func.func @transform_4(%arg0: i32) -> (i32, i32) {
    %c0_i32 = arith.constant 0 : i32
    %c0_i32_0 = arith.constant 0 : i32
    %c0_i32_1 = arith.constant 0 : i32
    return %c0_i32, %c0_i32_0 : i32, i32
  }
  func.func @transform_5(%arg0: i32) -> (i32, i32) {
    %c0_i32 = arith.constant 0 : i32
    %c0_i32_0 = arith.constant 0 : i32
    %c0_i32_1 = arith.constant 0 : i32
    return %c0_i32, %c0_i32_0 : i32, i32
  }
  func.func @transform_6(%arg0: i32) -> (i32, i32) {
    %c0_i32 = arith.constant 0 : i32
    %c0_i32_0 = arith.constant 0 : i32
    %c0_i32_1 = arith.constant 0 : i32
    return %c0_i32, %c0_i32_0 : i32, i32
  }
  func.func @transform_7(%arg0: i32) -> (i32, i32) {
    %c0_i32 = arith.constant 0 : i32
    %c0_i32_0 = arith.constant 0 : i32
    return %arg0, %c0_i32 : i32, i32
  }
  func.func @transform_8(%arg0: i32) -> (i32, i32) {
    %c0_i32 = arith.constant 0 : i32
    %c0_i32_0 = arith.constant 0 : i32
    return %arg0, %c0_i32 : i32, i32
  }
}

</mosaic_0001>

<llo_original>
// kernel: tpu_custom_call.1
$region0: #{tpu_custom_call.1}
  #allocation0 [shape = 'u32[]', space=smem, size = 0x4, offset = 0x4, fixed_abs, tag = 'smem constant byte address 0x4 - core index']
  #allocation1 [shape = 'u32[72,128]{1,0:T(1,128)}', space=vmem, size = 0x9000, scoped, tag = 'internal scratch']
  %s0 = inlined_call_operand.hbm [shape: f32[16,16], index: 0, kind: input, shape index: {}]
  %s1 = inlined_call_operand.hbm [shape: f32[16,128], index: 1, kind: input, shape index: {}]
  %s2 = inlined_call_operand.vmem [shape: f32[1,128], index: 2, kind: input, shape index: {}]
  %s3 = inlined_call_operand.hbm [shape: f32[128,128], index: 3, kind: input, shape index: {}]
  %s4 = inlined_call_operand.vmem [shape: f32[1,128], index: 4, kind: input, shape index: {}]
  %s5 = inlined_call_operand.hbm [shape: f32[128,128], index: 5, kind: input, shape index: {}]
  %s6 = inlined_call_operand.vmem [shape: f32[1,128], index: 6, kind: input, shape index: {}]
  %s7 = inlined_call_operand.vmem [shape: f32[16,1], index: 7, kind: output, shape index: {0}]
  %s8 = inlined_call_operand.vmem [shape: f32[16,3], index: 8, kind: output, shape index: {1}]
  %9 = xla_tuple %s7, %s8
  %s10 = sld [smem:[#allocation0]]
  $region62: #{tpu_custom_call.1} parent=0
    _
  %s12 = ssub.s32 1, %s10
  %s13 = scalar_select 0, %s12, %s10
  $region1: #{tpu_custom_call.1} parent=0
    #allocation2 [shape = 'u8[8192]{0}', space=vmem, size = 0x2000, scoped, tag = 'input window, operand 0, single buffered']
    #allocation3 [shape = 's32[1]{0}', space=sflag, size = 0x4, scoped, tag = 'scoped memory for tpu_custom_call.1']
    #allocation4 [shape = 'u8[8192]{0}', space=vmem, size = 0x2000, scoped, tag = 'input window, operand 1, single buffered']
    #allocation5 [shape = 's32[1]{0}', space=sflag, size = 0x4, scoped, tag = 'scoped memory for tpu_custom_call.1']
    #allocation6 [shape = 'u8[65536]{0}', space=vmem, size = 0x10000, scoped, tag = 'input window, operand 3, single buffered']
    #allocation7 [shape = 'u8[65536]{0}', space=vmem, size = 0x10000, scoped, tag = 'input window, operand 5, single buffered']
    #allocation8 [shape = 's32[1]{0}', space=sflag, size = 0x4, scoped, tag = 'scoped memory for tpu_custom_call.1']
    %14 = vsyncpa [#allocation3], 0
    %15 = vsyncpa [#allocation5], 0
    %16 = vsyncpa [#allocation8], 0
    // Predicated region
    $region2: #{tpu_custom_call.1} parent=1 // pred_check
      _
    $region3: #{tpu_custom_call.1} parent=1 // pred_check_branch
      %18 = sbr.rel (0) target = $region5
    $region4: #{tpu_custom_call.1} parent=1 // pred_region
      %20 = vsyncadd [#allocation3], 0
      %s21 = sshll.u32 %s0, 4
      %s22 = int_to_ptr.hbm [resolvable:$true] %s21
      %s23 = sshll.u32 [#allocation2], 4
      %s24 = int_to_ptr.vmem [resolvable:$true] %s23
      %29 = dma.hbm_to_vmem [thread:$0]  %s22, 256, %s24, [#allocation3], 128, 128, 8
    $region5: #{tpu_custom_call.1} parent=1 // pred_fallthru
      _
    // Predicated region
    $region6: #{tpu_custom_call.1} parent=1 // pred_check
      _
    $region7: #{tpu_custom_call.1} parent=1 // pred_check_branch
      %31 = sbr.rel (0) target = $region9
    $region8: #{tpu_custom_call.1} parent=1 // pred_region
      %33 = vsyncadd [#allocation5], 0
      %s34 = sshll.u32 %s1, 4
      %s35 = int_to_ptr.hbm [resolvable:$true] %s34
      %s36 = sshll.u32 [#allocation4], 4
      %s37 = int_to_ptr.vmem [resolvable:$true] %s36
      %42 = dma.hbm_to_vmem [thread:$0]  %s35, 256, %s37, [#allocation5], 128, 128, 8
    $region9: #{tpu_custom_call.1} parent=1 // pred_fallthru
      _
    // Predicated region
    $region10: #{tpu_custom_call.1} parent=1 // pred_check
      _
    $region11: #{tpu_custom_call.1} parent=1 // pred_check_branch
      %44 = sbr.rel (0) target = $region13
    $region12: #{tpu_custom_call.1} parent=1 // pred_region
      _
    $region13: #{tpu_custom_call.1} parent=1 // pred_fallthru
      _
    // Predicated region
    $region14: #{tpu_custom_call.1} parent=1 // pred_check
      _
    $region15: #{tpu_custom_call.1} parent=1 // pred_check_branch
      %46 = sbr.rel (0) target = $region17
    $region16: #{tpu_custom_call.1} parent=1 // pred_region
      %48 = vsyncadd [#allocation5], 0
      %s49 = sshll.u32 %s3, 4
      %s50 = int_to_ptr.hbm [resolvable:$true] %s49
      %s51 = sshll.u32 [#allocation6], 4
      %s52 = int_to_ptr.vmem [resolvable:$true] %s51
      %57 = dma.hbm_to_vmem [thread:$0]  %s50, 2048, %s52, [#allocation5], 128, 128, 8
    $region17: #{tpu_custom_call.1} parent=1 // pred_fallthru
      _
    // Predicated region
    $region18: #{tpu_custom_call.1} parent=1 // pred_check
      _
    $region19: #{tpu_custom_call.1} parent=1 // pred_check_branch
      %59 = sbr.rel (0) target = $region21
    $region20: #{tpu_custom_call.1} parent=1 // pred_region
      _
    $region21: #{tpu_custom_call.1} parent=1 // pred_fallthru
      _
    // Predicated region
    $region22: #{tpu_custom_call.1} parent=1 // pred_check
      _
    $region23: #{tpu_custom_call.1} parent=1 // pred_check_branch
      %61 = sbr.rel (0) target = $region25
    $region24: #{tpu_custom_call.1} parent=1 // pred_region
      %63 = vsyncadd [#allocation8], 0
      %s64 = sshll.u32 %s5, 4
      %s65 = int_to_ptr.hbm [resolvable:$true] %s64
      %s66 = sshll.u32 [#allocation7], 4
      %s67 = int_to_ptr.vmem [resolvable:$true] %s66
      %72 = dma.hbm_to_vmem [thread:$0]  %s65, 2048, %s67, [#allocation8], 128, 128, 8
    $region25: #{tpu_custom_call.1} parent=1 // pred_fallthru
      _
    // Predicated region
    $region26: #{tpu_custom_call.1} parent=1 // pred_check
      _
    $region27: #{tpu_custom_call.1} parent=1 // pred_check_branch
      %74 = sbr.rel (0) target = $region29
    $region28: #{tpu_custom_call.1} parent=1 // pred_region
      _
    $region29: #{tpu_custom_call.1} parent=1 // pred_fallthru
      _
    // Predicated region
    $region30: #{tpu_custom_call.1} parent=1 // pred_check
      _
    $region31: #{tpu_custom_call.1} parent=1 // pred_check_branch
      %76 = sbr.rel (0) target = $region33
    $region32: #{tpu_custom_call.1} parent=1 // pred_region
      %78 = dma.done [#allocation3], 256
    $region33: #{tpu_custom_call.1} parent=1 // pred_fallthru
      _
    // Predicated region
    $region34: #{tpu_custom_call.1} parent=1 // pred_check
      _
    $region35: #{tpu_custom_call.1} parent=1 // pred_check_branch
      %80 = sbr.rel (0) target = $region37
    $region36: #{tpu_custom_call.1} parent=1 // pred_region
      %82 = dma.done [#allocation5], 256
    $region37: #{tpu_custom_call.1} parent=1 // pred_fallthru
      _
    // Predicated region
    $region38: #{tpu_custom_call.1} parent=1 // pred_check
      _
    $region39: #{tpu_custom_call.1} parent=1 // pred_check_branch
      %84 = sbr.rel (0) target = $region41
    $region40: #{tpu_custom_call.1} parent=1 // pred_region
      %86 = dma.done [#allocation5], 2048
    $region41: #{tpu_custom_call.1} parent=1 // pred_fallthru
      _
    // Predicated region
    $region42: #{tpu_custom_call.1} parent=1 // pred_check
      _
    $region43: #{tpu_custom_call.1} parent=1 // pred_check_branch
      %88 = sbr.rel (0) target = $region45
    $region44: #{tpu_custom_call.1} parent=1 // pred_region
      %90 = dma.done [#allocation8], 2048
    $region45: #{tpu_custom_call.1} parent=1 // pred_fallthru
      _
    %v91 = vld [vmem:[#allocation2] sm:$0xff]
    %v92 = vld [vmem:[#allocation2 + $0x8] sm:$0xff]
    %v93 = vld [vmem:[#allocation4] sm:$0xff]
    %v94 = vld [vmem:[#allocation4 + $0x8] sm:$0xff]
    %v95 = vld [vmem:[%s2] sm:$0x1]
    %v97 = vperm.slane %v95, 0
    %vm99 = vcmask 130048
    %v101 = vsel %vm99, %v91, 0
    %v104 = vsel %vm99, %v92, 0
    %106 = vmatpush.msra.mxu0 0.0
    %107 = vmatpush.msra.mxu0 0.0
    %108 = vmatpush.msra.mxu0 0.0
    %109 = vmatpush.msra.mxu0 0.0
    %110 = vmatpush.msra.mxu0 0.0
    %111 = vmatpush.msra.mxu0 0.0
    %112 = vmatpush.msra.mxu0 0.0
    %113 = vmatpush.msra.mxu0 0.0
    %114 = vmatpush.msra.mxu0 0.0
    %115 = vmatpush.msra.mxu0 0.0
    %116 = vmatpush.msra.mxu0 0.0
    %117 = vmatpush.msra.mxu0 0.0
    %118 = vmatpush.msra.mxu0 0.0
    %119 = vmatpush.msra.mxu0 0.0
    %120 = vmatpush.msra.mxu0 %v94
    %121 = vmatpush.msra.mxu0 %v93
    %122 = vmatmul.f32.gmra.mxu0 %v101
    %v123 = vpop.f32.mrf.mxu0
    %v124 = vadd.f32 %v97, %v123
    %125 = vmatmul.f32.gmra.mxu0 %v104
    %v126 = vpop.f32.mrf.mxu0
    %v127 = vadd.f32 %v97, %v126
    %128 = vdwg.mxu0
    %v129 = vmax.f32 %v124, 0.0
    %v130 = vmax.f32 %v127, 0.0
    %v131 = vld [vmem:[#allocation6] sm:$0xff]
    %v132 = vld [vmem:[#allocation6 + $0x8] sm:$0xff]
    %v133 = vld [vmem:[#allocation6 + $0x10] sm:$0xff]
    %v134 = vld [vmem:[#allocation6 + $0x18] sm:$0xff]
    %v135 = vld [vmem:[#allocation6 + $0x20] sm:$0xff]
    %v136 = vld [vmem:[#allocation6 + $0x28] sm:$0xff]
    %v137 = vld [vmem:[#allocation6 + $0x30] sm:$0xff]
    %v138 = vld [vmem:[#allocation6 + $0x38] sm:$0xff]
    %v139 = vld [vmem:[#allocation6 + $0x40] sm:$0xff]
    %v140 = vld [vmem:[#allocation6 + $0x48] sm:$0xff]
    %v141 = vld [vmem:[#allocation6 + $0x50] sm:$0xff]
    %v142 = vld [vmem:[#allocation6 + $0x58] sm:$0xff]
    %v143 = vld [vmem:[#allocation6 + $0x60] sm:$0xff]
    %v144 = vld [vmem:[#allocation6 + $0x68] sm:$0xff]
    %v145 = vld [vmem:[#allocation6 + $0x70] sm:$0xff]
    %v146 = vld [vmem:[#allocation6 + $0x78] sm:$0xff]
    %v147 = vld [vmem:[%s4] sm:$0x1]
    %v149 = vperm.slane %v147, 0
    %151 = vmatpush.msra.mxu0 %v146
    %152 = vmatpush.msra.mxu0 %v145
    %153 = vmatpush.msra.mxu0 %v144
    %154 = vmatpush.msra.mxu0 %v143
    %155 = vmatpush.msra.mxu0 %v142
    %156 = vmatpush.msra.mxu0 %v141
    %157 = vmatpush.msra.mxu0 %v140
    %158 = vmatpush.msra.mxu0 %v139
    %159 = vmatpush.msra.mxu0 %v138
    %160 = vmatpush.msra.mxu0 %v137
    %161 = vmatpush.msra.mxu0 %v136
    %162 = vmatpush.msra.mxu0 %v135
    %163 = vmatpush.msra.mxu0 %v134
    %164 = vmatpush.msra.mxu0 %v133
    %165 = vmatpush.msra.mxu0 %v132
    %166 = vmatpush.msra.mxu0 %v131
    %167 = vmatmul.f32.gmra.mxu0 %v129
    %v168 = vpop.f32.mrf.mxu0
    %v169 = vadd.f32 %v149, %v168
    %170 = vmatmul.f32.gmra.mxu0 %v130
    %v171 = vpop.f32.mrf.mxu0
    %v172 = vadd.f32 %v149, %v171
    %173 = vdwg.mxu0
    %v174 = vmax.f32 %v169, 0.0
    %v175 = vmax.f32 %v172, 0.0
    %v176 = vld [vmem:[#allocation7] sm:$0xff]
    %v177 = vld [vmem:[#allocation7 + $0x8] sm:$0xff]
    %v178 = vld [vmem:[#allocation7 + $0x10] sm:$0xff]
    %v179 = vld [vmem:[#allocation7 + $0x18] sm:$0xff]
    %v180 = vld [vmem:[#allocation7 + $0x20] sm:$0xff]
    %v181 = vld [vmem:[#allocation7 + $0x28] sm:$0xff]
    %v182 = vld [vmem:[#allocation7 + $0x30] sm:$0xff]
    %v183 = vld [vmem:[#allocation7 + $0x38] sm:$0xff]
    %v184 = vld [vmem:[#allocation7 + $0x40] sm:$0xff]
    %v185 = vld [vmem:[#allocation7 + $0x48] sm:$0xff]
    %v186 = vld [vmem:[#allocation7 + $0x50] sm:$0xff]
    %v187 = vld [vmem:[#allocation7 + $0x58] sm:$0xff]
    %v188 = vld [vmem:[#allocation7 + $0x60] sm:$0xff]
    %v189 = vld [vmem:[#allocation7 + $0x68] sm:$0xff]
    %v190 = vld [vmem:[#allocation7 + $0x70] sm:$0xff]
    %v191 = vld [vmem:[#allocation7 + $0x78] sm:$0xff]
    %v192 = vld [vmem:[%s6] sm:$0x1]
    %v194 = vperm.slane %v192, 0
    %196 = vmatpush.msra.mxu0 %v191
    %197 = vmatpush.msra.mxu0 %v190
    %198 = vmatpush.msra.mxu0 %v189
    %199 = vmatpush.msra.mxu0 %v188
    %200 = vmatpush.msra.mxu0 %v187
    %201 = vmatpush.msra.mxu0 %v186
    %202 = vmatpush.msra.mxu0 %v185
    %203 = vmatpush.msra.mxu0 %v184
    %204 = vmatpush.msra.mxu0 %v183
    %205 = vmatpush.msra.mxu0 %v182
    %206 = vmatpush.msra.mxu0 %v181
    %207 = vmatpush.msra.mxu0 %v180
    %208 = vmatpush.msra.mxu0 %v179
    %209 = vmatpush.msra.mxu0 %v178
    %210 = vmatpush.msra.mxu0 %v177
    %211 = vmatpush.msra.mxu0 %v176
    %212 = vmatmul.f32.gmra.mxu0 %v174
    %v213 = vpop.f32.mrf.mxu0
    %v214 = vadd.f32 %v194, %v213
    %215 = vmatmul.f32.gmra.mxu0 %v175
    %v216 = vpop.f32.mrf.mxu0
    %v217 = vadd.f32 %v194, %v216
    %218 = vdwg.mxu0
    %vm219 = vcmask 7168
    %220 = vst.msk [vmem:[%s7] sm:$0xff] %vm219, %v214
    %221 = vst.msk [vmem:[%s7 + $0x8] sm:$0xff] %vm219, %v217
    %224 = vrot.lane.b32.xlu0 %v214, 127
    %v225 = vpop.permute.xlu0 %224
    %226 = vrot.lane.b32.xlu0 %v217, 127
    %v227 = vpop.permute.xlu0 %226
    %vm230 = vcmask 23552
    %231 = vst.msk [vmem:[%s8] sm:$0xff] %vm230, %v225
    %232 = vst.msk [vmem:[%s8 + $0x8] sm:$0xff] %vm230, %v227
    // Predicated region
    $region46: #{tpu_custom_call.1} parent=1 // pred_check
      _
    $region47: #{tpu_custom_call.1} parent=1 // pred_check_branch
      %234 = sbr.rel (0) target = $region49
    $region48: #{tpu_custom_call.1} parent=1 // pred_region
      _
    $region49: #{tpu_custom_call.1} parent=1 // pred_fallthru
      _
    // Predicated region
    $region50: #{tpu_custom_call.1} parent=1 // pred_check
      _
    $region51: #{tpu_custom_call.1} parent=1 // pred_check_branch
      %236 = sbr.rel (0) target = $region53
    $region52: #{tpu_custom_call.1} parent=1 // pred_region
      _
    $region53: #{tpu_custom_call.1} parent=1 // pred_fallthru
      _
    // Predicated region
    $region54: #{tpu_custom_call.1} parent=1 // pred_check
      _
    $region55: #{tpu_custom_call.1} parent=1 // pred_check_branch
      %238 = sbr.rel (0) target = $region57
    $region56: #{tpu_custom_call.1} parent=1 // pred_region
      _
    $region57: #{tpu_custom_call.1} parent=1 // pred_fallthru
      _
    // Predicated region
    $region58: #{tpu_custom_call.1} parent=1 // pred_check
      _
    $region59: #{tpu_custom_call.1} parent=1 // pred_check_branch
      %240 = sbr.rel (0) target = $region61
    $region60: #{tpu_custom_call.1} parent=1 // pred_region
      _
    $region61: #{tpu_custom_call.1} parent=1 // pred_fallthru
      _
    %241 = vsyncpa [#allocation3], 1
    %242 = vsyncpa [#allocation5], 1
    %243 = vsyncpa [#allocation8], 1

</llo_original>
